<compile_context>
chip_gen: v7x
topology: tpu7x:2x2x1
jax: 0.10.0
libtpu: 0.0.40
codegen_flags: <defaults>
</compile_context>

<pallas_src>
import functools

import jax
import jax.numpy as jnp
from jax.experimental import pallas as pl
from jax.experimental.pallas import tpu as pltpu


def _attn_kernel(xq_ref, xkv_ref, wq_ref, wkv_ref, wo_ref,
                 bq_ref, bkv_ref, bo_ref, o_ref, *scratch,
                 heads, mxu_dtype, single_kv):
    D = wq_ref.shape[0]
    d = D // heads

    # Fused K|V projection for the current kv tile: one MXU matmul instead of two.
    xkv = xkv_ref[0].astype(mxu_dtype)                                     # (TK, D)
    kv = jnp.dot(xkv, wkv_ref[...], preferred_element_type=jnp.float32)
    kv = kv + bkv_ref[...]                                                 # (TK, 2D) f32

    if single_kv:
        # Whole kv axis in one tile: plain softmax, no running-max / rescale bookkeeping.
        (acc_scr,) = scratch
        xq = xq_ref[0].astype(mxu_dtype)                                   # (TQ, D)
        # Softmax scale is already folded into wq / bq by the wrapper.
        q = jnp.dot(xq, wq_ref[...], preferred_element_type=jnp.float32) + bq_ref[...]
        q = q.astype(mxu_dtype)

        for h in range(heads):  # static (unrolled) loop, static slices
            lo, hi = h * d, (h + 1) * d
            kh = kv[:, lo:hi].astype(mxu_dtype)                            # (TK, d)
            vh = kv[:, D + lo:D + hi].astype(mxu_dtype)                    # (TK, d)
            s = jnp.dot(q[:, lo:hi], kh, preferred_element_type=jnp.float32) \
                if False else jnp.dot(q[:, lo:hi], kh.T, preferred_element_type=jnp.float32)
            p = jnp.exp(s - jnp.max(s, axis=-1, keepdims=True))            # (TQ, TK)
            inv_l = pl.reciprocal(jnp.sum(p, axis=-1, keepdims=True), approx=True)
            pv = jnp.dot(p.astype(mxu_dtype), vh, preferred_element_type=jnp.float32)
            acc_scr[:, lo:hi] = pv * inv_l

        out = jnp.dot(acc_scr[...].astype(mxu_dtype), wo_ref[...],
                      preferred_element_type=jnp.float32) + bo_ref[...]
        o_ref[0] = out.astype(o_ref.dtype)
        return

    # ---- multi kv-tile path: flash-style online softmax across kv tiles ----
    q_scr, acc_scr, m_scr, l_scr = scratch
    ki = pl.program_id(2)

    @pl.when(ki == 0)
    def _init():
        # Q projection for this query tile (scale pre-folded into wq/bq by the wrapper).
        xq = xq_ref[0].astype(mxu_dtype)                                   # (TQ, D)
        q = jnp.dot(xq, wq_ref[...], preferred_element_type=jnp.float32) + bq_ref[...]
        q_scr[...] = q.astype(q_scr.dtype)
        m_scr[...] = jnp.full(m_scr.shape, -jnp.inf, dtype=m_scr.dtype)
        l_scr[...] = jnp.zeros(l_scr.shape, dtype=l_scr.dtype)
        acc_scr[...] = jnp.zeros(acc_scr.shape, dtype=acc_scr.dtype)

    for h in range(heads):  # static (unrolled) loop, static slices
        lo, hi = h * d, (h + 1) * d
        qh = q_scr[:, lo:hi]                                               # (TQ, d)
        kh = kv[:, lo:hi].astype(mxu_dtype)                                # (TK, d)
        vh = kv[:, D + lo:D + hi].astype(mxu_dtype)                        # (TK, d)

        s = jnp.dot(qh, kh.T, preferred_element_type=jnp.float32)          # (TQ, TK)

        m_prev = m_scr[h]                                                  # (TQ, 1)
        m_new = jnp.maximum(m_prev, jnp.max(s, axis=-1, keepdims=True))
        alpha = jnp.exp(m_prev - m_new)
        p = jnp.exp(s - m_new)                                             # (TQ, TK)
        l_scr[h] = alpha * l_scr[h] + jnp.sum(p, axis=-1, keepdims=True)
        pv = jnp.dot(p.astype(mxu_dtype), vh, preferred_element_type=jnp.float32)
        acc_scr[:, lo:hi] = alpha * acc_scr[:, lo:hi] + pv
        m_scr[h] = m_new

    @pl.when(ki == pl.num_programs(2) - 1)
    def _finalize():
        # Deferred normalization: reciprocal on the EUP, multiply over (TQ, d) per head
        # instead of dividing the (TQ, TK) probability block on every kv step.
        for h in range(heads):
            lo, hi = h * d, (h + 1) * d
            inv_l = pl.reciprocal(l_scr[h], approx=True)                   # (TQ, 1)
            acc_scr[:, lo:hi] = acc_scr[:, lo:hi] * inv_l
        out = jnp.dot(acc_scr[...].astype(mxu_dtype), wo_ref[...],
                      preferred_element_type=jnp.float32) + bo_ref[...]
        o_ref[0] = out.astype(o_ref.dtype)


def _default_seq_tile():
    """256 on v6e/v7x (2x256 MXU), 128 on v5-generation chips (4x128 MXU)."""
    try:
        kind = jax.devices()[0].device_kind.lower()
    except Exception:
        return 256
    return 128 if "v5" in kind else 256


def _pick_tile(n, target):
    """Largest 8-aligned sequence tile <= target that divides n, else the whole axis."""
    if n <= target:
        return n
    for t in range(target, 7, -1):
        if n % t == 0 and t % 8 == 0:
            return t
    return n


def self_attention_external_projection(x, params, heads, *, mxu_dtype=None,
                                        tile_q=None, tile_kv=None,
                                        vmem_limit_bytes=48 * 1024 * 1024):
    """x: (B, N, D).  params: wq/wk/wv/wo of shape (D, D) and bq/bk/bv/bo of shape (1, D).

    mxu_dtype: dtype of the MXU matmul operands (e.g. jnp.bfloat16 on v6e/v7x).
    Accumulation and softmax statistics always stay in float32.
    """
    B, N, D = x.shape
    assert D % heads == 0, "heads must divide the channel dim"
    out_dtype = x.dtype
    scale = float(D) ** (-0.5)  # NOTE: full model dim, matching the PyTorch module
    if mxu_dtype is None:
        mxu_dtype = x.dtype

    target = _default_seq_tile()
    tq = tile_q or _pick_tile(N, target)
    tk = tile_kv or _pick_tile(N, target)
    assert N % tq == 0 and N % tk == 0
    n_kv = N // tk
    single_kv = (n_kv == 1)

    # Pre-cast x and weights once (halves their DMA bytes in bf16 mode); biases stay f32.
    # Softmax scale is folded into the Q projection (weights + bias) here, once.
    x_in = x.astype(mxu_dtype)
    wq = (params["wq"].astype(jnp.float32) * scale).astype(mxu_dtype)
    wkv = jnp.concatenate([params["wk"], params["wv"]], axis=1).astype(mxu_dtype)
    wo = params["wo"].astype(mxu_dtype)
    bq = params["bq"].astype(jnp.float32) * scale
    bkv = jnp.concatenate([params["bk"], params["bv"]], axis=1).astype(jnp.float32)
    bo = params["bo"].astype(jnp.float32)

    kernel = functools.partial(_attn_kernel, heads=heads, mxu_dtype=mxu_dtype,
                               single_kv=single_kv)
    const = lambda b, qi, ki: (0, 0)

    # Output accumulator slab is always needed; online-softmax state only when >1 kv tile.
    scratch = [pltpu.VMEM((tq, D), jnp.float32)]                  # unnormalized output acc
    if not single_kv:
        scratch = ([pltpu.VMEM((tq, D), mxu_dtype)]               # scaled Q for this q tile
                   + scratch
                   + [pltpu.VMEM((heads, tq, 1), jnp.float32),    # running row-max per head
                      pltpu.VMEM((heads, tq, 1), jnp.float32)])   # running row-sum per head

    return pl.pallas_call(
        kernel,
        out_shape=jax.ShapeDtypeStruct((B, N, D), out_dtype),
        grid=(B, N // tq, n_kv),
        in_specs=[
            pl.BlockSpec((1, tq, D), lambda b, qi, ki: (b, qi, 0)),   # x (query rows)
            pl.BlockSpec((1, tk, D), lambda b, qi, ki: (b, ki, 0)),   # x (kv rows)
            pl.BlockSpec((D, D), const),                              # Wq (pre-scaled)
            pl.BlockSpec((D, 2 * D), const),                          # Wk | Wv fused
            pl.BlockSpec((D, D), const),                              # Wo
            pl.BlockSpec((1, D), const),                              # bq (pre-scaled)
            pl.BlockSpec((1, 2 * D), const),                          # bk | bv fused
            pl.BlockSpec((1, D), const),                              # bo
        ],
        out_specs=pl.BlockSpec((1, tq, D), lambda b, qi, ki: (b, qi, 0)),
        scratch_shapes=scratch,
        compiler_params=pltpu.CompilerParams(
            dimension_semantics=("parallel", "parallel", "arbitrary"),
            vmem_limit_bytes=vmem_limit_bytes),
    )(x_in, x_in, wq, wkv, wo, bq, bkv, bo)


def _reference(x, params, heads):
    """Pure-JAX reference mirroring the PyTorch forward (mask=None)."""
    B, N, D = x.shape
    d = D // heads
    scale = float(D) ** (-0.5)
    q = x @ params["wq"] + params["bq"]
    k = x @ params["wk"] + params["bk"]
    v = x @ params["wv"] + params["bv"]
    q = q.reshape(B, N, heads, d).transpose(0, 2, 1, 3)
    k = k.reshape(B, N, heads, d).transpose(0, 2, 1, 3)
    v = v.reshape(B, N, heads, d).transpose(0, 2, 1, 3)
    dots = jnp.einsum("bhid,bhjd->bhij", q, k) * scale
    attn = jax.nn.softmax(dots, axis=-1)
    out = jnp.einsum("bhij,bhjd->bhid", attn, v)
    out = out.transpose(0, 2, 1, 3).reshape(B, N, D)
    return out @ params["wo"] + params["bo"]


if __name__ == "__main__":
    B, N, D, HEADS = 2, 16, 32, 2

    key = jax.random.PRNGKey(0)
    kx, kq, kk, kv, ko, kbq, kbk, kbv, kbo = jax.random.split(key, 9)

    x = jax.random.normal(kx, (B, N, D), dtype=jnp.float32)
    params = {
        "wq": jax.random.normal(kq, (D, D), dtype=jnp.float32) * 0.05,
        "wk": jax.random.normal(kk, (D, D), dtype=jnp.float32) * 0.05,
        "wv": jax.random.normal(kv, (D, D), dtype=jnp.float32) * 0.05,
        "wo": jax.random.normal(ko, (D, D), dtype=jnp.float32) * 0.05,
        "bq": jax.random.normal(kbq, (1, D), dtype=jnp.float32) * 0.01,
        "bk": jax.random.normal(kbk, (1, D), dtype=jnp.float32) * 0.01,
        "bv": jax.random.normal(kbv, (1, D), dtype=jnp.float32) * 0.01,
        "bo": jax.random.normal(kbo, (1, D), dtype=jnp.float32) * 0.01,
    }

    ref = jax.block_until_ready(_reference(x, params, HEADS))

    # f32 MXU path, single-kv-tile specialization (default tiles cover N).
    out = jax.block_until_ready(self_attention_external_projection(x, params, HEADS))
    assert out.shape == (B, N, D)
    assert jnp.allclose(out, ref, atol=5e-3, rtol=5e-3), "f32 single-tile mismatch"

    # f32 MXU path, forced multi-tile grid to exercise the online-softmax reduction.
    out_tiled = jax.block_until_ready(
        self_attention_external_projection(x, params, HEADS, tile_q=8, tile_kv=8))
    assert out_tiled.shape == (B, N, D)
    assert jnp.allclose(out_tiled, ref, atol=5e-3, rtol=5e-3), "f32 multi-tile mismatch"

    # bf16 MXU-operand path (v6e/v7x style; f32 accumulation and softmax stats).
    out_bf16 = jax.block_until_ready(
        self_attention_external_projection(x, params, HEADS, mxu_dtype=jnp.bfloat16))
    assert out_bf16.shape == (B, N, D)
    assert jnp.allclose(out_bf16, ref, atol=3e-2, rtol=3e-2), "bf16 path mismatch"

    print("KERNEL_OK")
</pallas_src>

<mosaic_0001>
module attributes {stable_mosaic.version = 11 : i64} {
  func.func @_attn_kernel(%arg0: i32, %arg1: i32, %arg2: i32, %arg3: memref<1x16x32xf32, #tpu.memory_space<vmem>>, %arg4: memref<1x16x32xf32, #tpu.memory_space<vmem>>, %arg5: memref<32x32xf32, #tpu.memory_space<vmem>>, %arg6: memref<32x64xf32, #tpu.memory_space<vmem>>, %arg7: memref<32x32xf32, #tpu.memory_space<vmem>>, %arg8: memref<1x32xf32, #tpu.memory_space<vmem>>, %arg9: memref<1x64xf32, #tpu.memory_space<vmem>>, %arg10: memref<1x32xf32, #tpu.memory_space<vmem>>, %arg11: memref<1x16x32xf32, #tpu.memory_space<vmem>>, %arg12: memref<16x32xf32, #tpu.memory_space<vmem>>) attributes {dimension_semantics = [#tpu.dimension_semantics<parallel>, #tpu.dimension_semantics<parallel>, #tpu.dimension_semantics<arbitrary>], iteration_bounds = array<i64: 2, 1, 1>, scalar_prefetch = 0 : i64, scratch_operands = 1 : i64, tpu.core_type = #tpu.core_type<tc>, window_params = [{transform_indices = @transform_0, window_bounds = array<i64: 1, 16, 32>}, {transform_indices = @transform_1, window_bounds = array<i64: 1, 16, 32>}, {pipeline_mode = #tpu.pipeline_mode<synchronous>, transform_indices = @transform_2, window_bounds = array<i64: 32, 32>}, {pipeline_mode = #tpu.pipeline_mode<synchronous>, transform_indices = @transform_3, window_bounds = array<i64: 32, 64>}, {pipeline_mode = #tpu.pipeline_mode<synchronous>, transform_indices = @transform_4, window_bounds = array<i64: 32, 32>}, {pipeline_mode = #tpu.pipeline_mode<synchronous>, transform_indices = @transform_5, window_bounds = array<i64: 1, 32>}, {pipeline_mode = #tpu.pipeline_mode<synchronous>, transform_indices = @transform_6, window_bounds = array<i64: 1, 64>}, {pipeline_mode = #tpu.pipeline_mode<synchronous>, transform_indices = @transform_7, window_bounds = array<i64: 1, 32>}, {transform_indices = @transform_8, window_bounds = array<i64: 1, 16, 32>}]} {
    %c0 = arith.constant 0 : index
    %c0_0 = arith.constant 0 : index
    %c0_1 = arith.constant 0 : index
    %0 = vector.load %arg4[%c0, %c0_0, %c0_1] : memref<1x16x32xf32, #tpu.memory_space<vmem>>, vector<1x16x32xf32>
    %1 = vector.shape_cast %0 : vector<1x16x32xf32> to vector<16x32xf32>
    %c0_2 = arith.constant 0 : index
    %c0_3 = arith.constant 0 : index
    %2 = vector.load %arg6[%c0_2, %c0_3] : memref<32x64xf32, #tpu.memory_space<vmem>>, vector<32x64xf32>
    %cst = arith.constant dense<0.000000e+00> : vector<16x64xf32>
    %3 = tpu.matmul %1, %2, %cst {dimension_numbers = #tpu.dot_dimension_numbers<[1], [0], [0], [1], [0, 0, 1, 1], [], []>} : vector<16x32xf32>, vector<32x64xf32>, vector<16x64xf32> -> vector<16x64xf32>
    %c0_4 = arith.constant 0 : index
    %c0_5 = arith.constant 0 : index
    %4 = vector.load %arg9[%c0_4, %c0_5] : memref<1x64xf32, #tpu.memory_space<vmem>>, vector<1x64xf32>
    %5 = vector.broadcast %4 : vector<1x64xf32> to vector<16x64xf32>
    %6 = arith.addf %3, %5 : vector<16x64xf32>
    %c0_6 = arith.constant 0 : index
    %c0_7 = arith.constant 0 : index
    %c0_8 = arith.constant 0 : index
    %7 = vector.load %arg3[%c0_6, %c0_7, %c0_8] : memref<1x16x32xf32, #tpu.memory_space<vmem>>, vector<1x16x32xf32>
    %8 = vector.shape_cast %7 : vector<1x16x32xf32> to vector<16x32xf32>
    %c0_9 = arith.constant 0 : index
    %c0_10 = arith.constant 0 : index
    %9 = vector.load %arg5[%c0_9, %c0_10] : memref<32x32xf32, #tpu.memory_space<vmem>>, vector<32x32xf32>
    %cst_11 = arith.constant dense<0.000000e+00> : vector<16x32xf32>
    %10 = tpu.matmul %8, %9, %cst_11 {dimension_numbers = #tpu.dot_dimension_numbers<[1], [0], [0], [1], [0, 0, 1, 1], [], []>} : vector<16x32xf32>, vector<32x32xf32>, vector<16x32xf32> -> vector<16x32xf32>
    %c0_12 = arith.constant 0 : index
    %c0_13 = arith.constant 0 : index
    %11 = vector.load %arg8[%c0_12, %c0_13] : memref<1x32xf32, #tpu.memory_space<vmem>>, vector<1x32xf32>
    %12 = vector.broadcast %11 : vector<1x32xf32> to vector<16x32xf32>
    %13 = arith.addf %10, %12 : vector<16x32xf32>
    %14 = vector.extract_strided_slice %6 {offsets = [0, 0], sizes = [16, 16], strides = [1, 1]} : vector<16x64xf32> to vector<16x16xf32>
    %15 = vector.extract_strided_slice %6 {offsets = [0, 32], sizes = [16, 16], strides = [1, 1]} : vector<16x64xf32> to vector<16x16xf32>
    %16 = vector.extract_strided_slice %13 {offsets = [0, 0], sizes = [16, 16], strides = [1, 1]} : vector<16x32xf32> to vector<16x16xf32>
    %17 = tpu.transpose %14, [1, 0] : vector<16x16xf32> -> vector<16x16xf32>
    %cst_14 = arith.constant dense<0.000000e+00> : vector<16x16xf32>
    %18 = tpu.matmul %16, %17, %cst_14 {dimension_numbers = #tpu.dot_dimension_numbers<[1], [0], [0], [1], [0, 0, 1, 1], [], []>} : vector<16x16xf32>, vector<16x16xf32>, vector<16x16xf32> -> vector<16x16xf32>
    %cst_15 = arith.constant dense<0xFF800000> : vector<16xf32>
    %19 = vector.multi_reduction <maximumf>, %18, %cst_15 [1] : vector<16x16xf32> to vector<16xf32>
    %20 = vector.shape_cast %19 : vector<16xf32> to vector<16x1xf32>
    %21 = vector.broadcast %20 : vector<16x1xf32> to vector<16x16xf32>
    %22 = arith.subf %18, %21 : vector<16x16xf32>
    %23 = math.exp %22 : vector<16x16xf32>
    %cst_16 = arith.constant dense<0.000000e+00> : vector<16xf32>
    %24 = vector.multi_reduction <add>, %23, %cst_16 [1] : vector<16x16xf32> to vector<16xf32>
    %25 = vector.shape_cast %24 : vector<16xf32> to vector<16x1xf32>
    %26 = tpu.reciprocal %25 {approx = true} : vector<16x1xf32> -> vector<16x1xf32>
    %cst_17 = arith.constant dense<0.000000e+00> : vector<16x16xf32>
    %27 = tpu.matmul %23, %15, %cst_17 {dimension_numbers = #tpu.dot_dimension_numbers<[1], [0], [0], [1], [0, 0, 1, 1], [], []>} : vector<16x16xf32>, vector<16x16xf32>, vector<16x16xf32> -> vector<16x16xf32>
    %28 = vector.broadcast %26 : vector<16x1xf32> to vector<16x16xf32>
    %29 = arith.mulf %27, %28 : vector<16x16xf32>
    %c0_18 = arith.constant 0 : index
    %c0_19 = arith.constant 0 : index
    %30 = vector.load %arg12[%c0_18, %c0_19] : memref<16x32xf32, #tpu.memory_space<vmem>>, vector<16x16xf32>
    tpu.vector_store %arg12[%c0_18, %c0_19], %29 {strides = array<i32>} : memref<16x32xf32, #tpu.memory_space<vmem>>, vector<16x16xf32>,
    %31 = vector.extract_strided_slice %6 {offsets = [0, 16], sizes = [16, 16], strides = [1, 1]} : vector<16x64xf32> to vector<16x16xf32>
    %32 = vector.extract_strided_slice %6 {offsets = [0, 48], sizes = [16, 16], strides = [1, 1]} : vector<16x64xf32> to vector<16x16xf32>
    %33 = vector.extract_strided_slice %13 {offsets = [0, 16], sizes = [16, 16], strides = [1, 1]} : vector<16x32xf32> to vector<16x16xf32>
    %34 = tpu.transpose %31, [1, 0] : vector<16x16xf32> -> vector<16x16xf32>
    %cst_20 = arith.constant dense<0.000000e+00> : vector<16x16xf32>
    %35 = tpu.matmul %33, %34, %cst_20 {dimension_numbers = #tpu.dot_dimension_numbers<[1], [0], [0], [1], [0, 0, 1, 1], [], []>} : vector<16x16xf32>, vector<16x16xf32>, vector<16x16xf32> -> vector<16x16xf32>
    %cst_21 = arith.constant dense<0xFF800000> : vector<16xf32>
    %36 = vector.multi_reduction <maximumf>, %35, %cst_21 [1] : vector<16x16xf32> to vector<16xf32>
    %37 = vector.shape_cast %36 : vector<16xf32> to vector<16x1xf32>
    %38 = vector.broadcast %37 : vector<16x1xf32> to vector<16x16xf32>
    %39 = arith.subf %35, %38 : vector<16x16xf32>
    %40 = math.exp %39 : vector<16x16xf32>
    %cst_22 = arith.constant dense<0.000000e+00> : vector<16xf32>
    %41 = vector.multi_reduction <add>, %40, %cst_22 [1] : vector<16x16xf32> to vector<16xf32>
    %42 = vector.shape_cast %41 : vector<16xf32> to vector<16x1xf32>
    %43 = tpu.reciprocal %42 {approx = true} : vector<16x1xf32> -> vector<16x1xf32>
    %cst_23 = arith.constant dense<0.000000e+00> : vector<16x16xf32>
    %44 = tpu.matmul %40, %32, %cst_23 {dimension_numbers = #tpu.dot_dimension_numbers<[1], [0], [0], [1], [0, 0, 1, 1], [], []>} : vector<16x16xf32>, vector<16x16xf32>, vector<16x16xf32> -> vector<16x16xf32>
    %45 = vector.broadcast %43 : vector<16x1xf32> to vector<16x16xf32>
    %46 = arith.mulf %44, %45 : vector<16x16xf32>
    %c0_24 = arith.constant 0 : index
    %c16 = arith.constant 16 : index
    %47 = vector.load %arg12[%c0_24, %c16] : memref<16x32xf32, #tpu.memory_space<vmem>>, vector<16x16xf32>
    tpu.vector_store %arg12[%c0_24, %c16], %46 {strides = array<i32>} : memref<16x32xf32, #tpu.memory_space<vmem>>, vector<16x16xf32>,
    %c0_25 = arith.constant 0 : index
    %c0_26 = arith.constant 0 : index
    %48 = vector.load %arg12[%c0_25, %c0_26] : memref<16x32xf32, #tpu.memory_space<vmem>>, vector<16x32xf32>
    %c0_27 = arith.constant 0 : index
    %c0_28 = arith.constant 0 : index
    %49 = vector.load %arg7[%c0_27, %c0_28] : memref<32x32xf32, #tpu.memory_space<vmem>>, vector<32x32xf32>
    %cst_29 = arith.constant dense<0.000000e+00> : vector<16x32xf32>
    %50 = tpu.matmul %48, %49, %cst_29 {dimension_numbers = #tpu.dot_dimension_numbers<[1], [0], [0], [1], [0, 0, 1, 1], [], []>} : vector<16x32xf32>, vector<32x32xf32>, vector<16x32xf32> -> vector<16x32xf32>
    %c0_30 = arith.constant 0 : index
    %c0_31 = arith.constant 0 : index
    %51 = vector.load %arg10[%c0_30, %c0_31] : memref<1x32xf32, #tpu.memory_space<vmem>>, vector<1x32xf32>
    %52 = vector.broadcast %51 : vector<1x32xf32> to vector<16x32xf32>
    %53 = arith.addf %50, %52 : vector<16x32xf32>
    %c0_32 = arith.constant 0 : index
    %c0_33 = arith.constant 0 : index
    %c0_34 = arith.constant 0 : index
    %54 = vector.load %arg11[%c0_32, %c0_33, %c0_34] : memref<1x16x32xf32, #tpu.memory_space<vmem>>, vector<1x16x32xf32>
    %55 = vector.shape_cast %54 : vector<1x16x32xf32> to vector<16x32xf32>
    %56 = vector.shape_cast %53 : vector<16x32xf32> to vector<1x16x32xf32>
    tpu.vector_store %arg11[%c0_32, %c0_33, %c0_34], %56 {strides = array<i32>} : memref<1x16x32xf32, #tpu.memory_space<vmem>>, vector<1x16x32xf32>,
    return
  }
  func.func @transform_0(%arg0: i32, %arg1: i32, %arg2: i32) -> (i32, i32, i32) {
    %c0_i32 = arith.constant 0 : i32
    %c0_i32_0 = arith.constant 0 : i32
    return %arg0, %arg1, %c0_i32 : i32, i32, i32
  }
  func.func @transform_1(%arg0: i32, %arg1: i32, %arg2: i32) -> (i32, i32, i32) {
    %c0_i32 = arith.constant 0 : i32
    %c0_i32_0 = arith.constant 0 : i32
    return %arg0, %arg2, %c0_i32 : i32, i32, i32
  }
  func.func @transform_2(%arg0: i32, %arg1: i32, %arg2: i32) -> (i32, i32) {
    %c0_i32 = arith.constant 0 : i32
    %c0_i32_0 = arith.constant 0 : i32
    %c0_i32_1 = arith.constant 0 : i32
    return %c0_i32, %c0_i32_0 : i32, i32
  }
  func.func @transform_3(%arg0: i32, %arg1: i32, %arg2: i32) -> (i32, i32) {
    %c0_i32 = arith.constant 0 : i32
    %c0_i32_0 = arith.constant 0 : i32
    %c0_i32_1 = arith.constant 0 : i32
    return %c0_i32, %c0_i32_0 : i32, i32
  }
  func.func @transform_4(%arg0: i32, %arg1: i32, %arg2: i32) -> (i32, i32) {
    %c0_i32 = arith.constant 0 : i32
    %c0_i32_0 = arith.constant 0 : i32
    %c0_i32_1 = arith.constant 0 : i32
    return %c0_i32, %c0_i32_0 : i32, i32
  }
  func.func @transform_5(%arg0: i32, %arg1: i32, %arg2: i32) -> (i32, i32) {
    %c0_i32 = arith.constant 0 : i32
    %c0_i32_0 = arith.constant 0 : i32
    %c0_i32_1 = arith.constant 0 : i32
    return %c0_i32, %c0_i32_0 : i32, i32
  }
  func.func @transform_6(%arg0: i32, %arg1: i32, %arg2: i32) -> (i32, i32) {
    %c0_i32 = arith.constant 0 : i32
    %c0_i32_0 = arith.constant 0 : i32
    %c0_i32_1 = arith.constant 0 : i32
    return %c0_i32, %c0_i32_0 : i32, i32
  }
  func.func @transform_7(%arg0: i32, %arg1: i32, %arg2: i32) -> (i32, i32) {
    %c0_i32 = arith.constant 0 : i32
    %c0_i32_0 = arith.constant 0 : i32
    %c0_i32_1 = arith.constant 0 : i32
    return %c0_i32, %c0_i32_0 : i32, i32
  }
  func.func @transform_8(%arg0: i32, %arg1: i32, %arg2: i32) -> (i32, i32, i32) {
    %c0_i32 = arith.constant 0 : i32
    %c0_i32_0 = arith.constant 0 : i32
    return %arg0, %arg1, %c0_i32 : i32, i32, i32
  }
}

</mosaic_0001>

<llo_original>
// kernel: tpu_custom_call.1
$region0: #{tpu_custom_call.1}
  #allocation0 [shape = 'u32[]', space=smem, size = 0x4, offset = 0x4, fixed_abs, tag = 'smem constant byte address 0x4 - core index']
  #allocation1 [shape = 'u32[144,128]{1,0:T(1,128)}', space=vmem, size = 0x12000, scoped, tag = 'internal scratch']
  #allocation2 [shape = 'f32[16,32]{1,0:T(8,128)}', space=vmem, size = 0x2000, scoped, tag = 'scratch operand']
  %s0 = inlined_call_operand.hbm [shape: f32[2,16,32], index: 0, kind: input, shape index: {}]
  %s1 = inlined_call_operand.hbm [shape: f32[2,16,32], index: 1, kind: input, shape index: {}]
  %s2 = inlined_call_operand.hbm [shape: f32[32,32], index: 2, kind: input, shape index: {}]
  %s3 = inlined_call_operand.hbm [shape: f32[32,64], index: 3, kind: input, shape index: {}]
  %s4 = inlined_call_operand.hbm [shape: f32[32,32], index: 4, kind: input, shape index: {}]
  %s5 = inlined_call_operand.vmem [shape: f32[1,32], index: 5, kind: input, shape index: {}]
  %s6 = inlined_call_operand.vmem [shape: f32[1,64], index: 6, kind: input, shape index: {}]
  %s7 = inlined_call_operand.vmem [shape: f32[1,32], index: 7, kind: input, shape index: {}]
  %s8 = inlined_call_operand.hbm [shape: f32[2,16,32], index: 8, kind: output, shape index: {}]
  %s9 = sld [smem:[#allocation0]]
  $region85: #{tpu_custom_call.1} parent=0
    _
  %s11 = ssub.s32 1, %s9
  %s12 = scalar_select 0, %s11, %s9
  $region1: #{tpu_custom_call.1} parent=0
    #allocation3 [shape = 'u8[16384]{0}', space=vmem, size = 0x4000, scoped, tag = 'input window, operand 0']
    #allocation4 [shape = 's32[2]{0}', space=sflag, size = 0x8, scoped, tag = 'scoped memory for tpu_custom_call.1']
    #allocation5 [shape = 's32[2]{0}', space=sflag, size = 0x8, scoped, tag = 'scoped memory for tpu_custom_call.1']
    #allocation6 [shape = 'u8[16384]{0}', space=vmem, size = 0x4000, scoped, tag = 'input window, operand 1']
    #allocation7 [shape = 's32[2]{0}', space=sflag, size = 0x8, scoped, tag = 'scoped memory for tpu_custom_call.1']
    #allocation8 [shape = 'u8[16384]{0}', space=vmem, size = 0x4000, scoped, tag = 'input window, operand 2, single buffered']
    #allocation9 [shape = 'u8[16384]{0}', space=vmem, size = 0x4000, scoped, tag = 'input window, operand 3, single buffered']
    #allocation10 [shape = 's32[1]{0}', space=sflag, size = 0x4, scoped, tag = 'scoped memory for tpu_custom_call.1']
    #allocation11 [shape = 'u8[16384]{0}', space=vmem, size = 0x4000, scoped, tag = 'input window, operand 4, single buffered']
    #allocation12 [shape = 'u8[16384]{0}', space=vmem, size = 0x4000, scoped, tag = 'output window, operand 0']
    %13 = vsyncpa [#allocation4], 0
    %s14 = scalar_lea.sflag [#allocation4], 1
    %15 = vsyncpa %s14, 0
    %16 = vsyncpa [#allocation7], 0
    %s17 = scalar_lea.sflag [#allocation7], 1
    %18 = vsyncpa %s17, 0
    %19 = vsyncpa [#allocation10], 0
    %20 = vsyncpa [#allocation5], 0
    %s21 = scalar_lea.sflag [#allocation5], 1
    %22 = vsyncpa %s21, 0
    loop: start=0, step=1, limit=4
    $region2: #{tpu_custom_call.1} parent=1 // loop_pre_header
      _
    $region3: #{tpu_custom_call.1} parent=1 // loop_header
      %s24 = sphi 0, %s28
      %p25 = scmp.ge.s32.totalorder %s24, 4
      %s31 = sphi 0, %s50
      %s32 = sphi 0, %s46
      %s33 = sphi 0, %s42
      %s34 = sphi 0, %s31
      %s35 = sphi 0, %s32
      %s36 = sphi 0, %s33
      %s37 = sphi 0, %s34
      %s38 = sphi 0, %s35
      %s39 = sphi 0, %s36
      %s55 = sphi 0, %s57
      %s58 = sphi 0, %s55
      %s59 = sphi 0, %s58
      %s75 = sphi 0, %s59
      %s83 = sphi 0, %s85
      %s86 = sphi 0, %s83
      %s87 = sphi 0, %s86
      %s103 = sphi 0, %s87
      %s107 = sphi 0, %s107
      %s109 = sphi 0, %s107
      %s110 = sphi 0, %s109
      %s124 = sphi 0, %s110
      %s128 = sphi 0, %s128
      %s130 = sphi 0, %s128
      %s131 = sphi 0, %s130
      %s145 = sphi 0, %s131
      %s149 = sphi 0, %s149
      %s151 = sphi 0, %s149
      %s152 = sphi 0, %s151
      %s166 = sphi 0, %s152
      %s170 = sphi 0, %s170
      %s172 = sphi 0, %s170
      %s173 = sphi 0, %s172
      %s187 = sphi 0, %s173
      %s191 = sphi 0, %s191
      %s193 = sphi 0, %s191
      %s194 = sphi 0, %s193
      %s208 = sphi 0, %s194
      %s212 = sphi 0, %s212
      %s214 = sphi 0, %s212
      %s215 = sphi 0, %s214
      %s229 = sphi 0, %s215
      %s237 = sphi 0, %s239
      %s240 = sphi 0, %s237
      %s241 = sphi 0, %s240
      %s257 = sphi 0, %s241
    $region4: #{tpu_custom_call.1} parent=1 // loop_header_branch
      %27 = sbr.rel (%p25) target = $region8
    $region5: #{tpu_custom_call.1} parent=1 // loop_body
      %s29 = ssub.s32 %s24, 1
      %s30 = ssub.s32 %s24, 2
      %s40 = sadd.s32 1, %s33
      %p41 = scmp.ge.s32.totalorder %s40, 1
      %s42 = scalar_select %p41, 0, %s40
      %s43 = sadd.s32 1, %s32
      %s44 = scalar_select %p41, %s43, %s32
      %p45 = scmp.ge.s32.totalorder %s44, 1
      %s46 = scalar_select %p45, 0, %s44
      %s47 = sadd.s32 1, %s31
      %s48 = scalar_select %p45, %s47, %s31
      %p49 = scmp.ge.s32.totalorder %s48, 2
      %s50 = scalar_select %p49, 0, %s48
      %s51 = ssub.s32 %s31, %s50
      %s52 = ssub.s32 %s32, %s46
      %s53 = sor.u32 %s51, %s52
      %p54 = scmp.eq.s32.totalorder %s53, 0
      %s56 = sadd.s32 %s55, 1
      %s57 = scalar_select %p54, %s55, %s56
      %p60 = pneg %p54
      %p61 = scmp.eq.s32.totalorder %s24, 1
      %p62 = por %p60, %p61
      %p63 = scmp.ne.s32.totalorder %s55, %s58
      %p64 = scmp.eq.s32.totalorder %s24, 0
      %p65 = por %p63, %p64
      %p66 = scmp.ne.s32.totalorder %s55, %s58
      %p67 = scmp.eq.s32.totalorder %s29, 1
      %p68 = por %p66, %p67
      %p69 = scmp.ne.s32.totalorder %s58, %s59
      %p70 = scmp.eq.s32.totalorder %s29, 0
      %p71 = por %p69, %p70
      %p72 = scmp.ne.s32.totalorder %s58, %s59
      %p73 = scmp.eq.s32.totalorder %s30, 1
      %p74 = por %p72, %p73
      %p76 = scmp.ne.s32.totalorder %s59, %s75
      %p77 = scmp.eq.s32.totalorder %s30, 0
      %p78 = por %p76, %p77
      %s79 = ssub.s32 %s31, %s50
      %s80 = ssub.s32 %s33, %s42
      %s81 = sor.u32 %s79, %s80
      %p82 = scmp.eq.s32.totalorder %s81, 0
      %s84 = sadd.s32 %s83, 1
      %s85 = scalar_select %p82, %s83, %s84
      %p88 = pneg %p82
      %p89 = scmp.eq.s32.totalorder %s24, 1
      %p90 = por %p88, %p89
      %p91 = scmp.ne.s32.totalorder %s83, %s86
      %p92 = scmp.eq.s32.totalorder %s24, 0
      %p93 = por %p91, %p92
      %p94 = scmp.ne.s32.totalorder %s83, %s86
      %p95 = scmp.eq.s32.totalorder %s29, 1
      %p96 = por %p94, %p95
      %p97 = scmp.ne.s32.totalorder %s86, %s87
      %p98 = scmp.eq.s32.totalorder %s29, 0
      %p99 = por %p97, %p98
      %p100 = scmp.ne.s32.totalorder %s86, %s87
      %p101 = scmp.eq.s32.totalorder %s30, 1
      %p102 = por %p100, %p101
      %p104 = scmp.ne.s32.totalorder %s87, %s103
      %p105 = scmp.eq.s32.totalorder %s30, 0
      %p106 = por %p104, %p105
      %s108 = sadd.s32 %s107, 1
      %p111 = scmp.eq.s32.totalorder %s24, 1
      %p112 = scmp.ne.s32.totalorder %s107, %s109
      %p113 = scmp.eq.s32.totalorder %s24, 0
      %p114 = por %p112, %p113
      %p115 = scmp.ne.s32.totalorder %s107, %s109
      %p116 = scmp.eq.s32.totalorder %s29, 1
      %p117 = por %p115, %p116
      %p118 = scmp.ne.s32.totalorder %s109, %s110
      %p119 = scmp.eq.s32.totalorder %s29, 0
      %p120 = por %p118, %p119
      %p121 = scmp.ne.s32.totalorder %s109, %s110
      %p122 = scmp.eq.s32.totalorder %s30, 1
      %p123 = por %p121, %p122
      %p125 = scmp.ne.s32.totalorder %s110, %s124
      %p126 = scmp.eq.s32.totalorder %s30, 0
      %p127 = por %p125, %p126
      %s129 = sadd.s32 %s128, 1
      %p132 = scmp.eq.s32.totalorder %s24, 1
      %p133 = scmp.ne.s32.totalorder %s128, %s130
      %p134 = scmp.eq.s32.totalorder %s24, 0
      %p135 = por %p133, %p134
      %p136 = scmp.ne.s32.totalorder %s128, %s130
      %p137 = scmp.eq.s32.totalorder %s29, 1
      %p138 = por %p136, %p137
      %p139 = scmp.ne.s32.totalorder %s130, %s131
      %p140 = scmp.eq.s32.totalorder %s29, 0
      %p141 = por %p139, %p140
      %p142 = scmp.ne.s32.totalorder %s130, %s131
      %p143 = scmp.eq.s32.totalorder %s30, 1
      %p144 = por %p142, %p143
      %p146 = scmp.ne.s32.totalorder %s131, %s145
      %p147 = scmp.eq.s32.totalorder %s30, 0
      %p148 = por %p146, %p147
      %s150 = sadd.s32 %s149, 1
      %p153 = scmp.eq.s32.totalorder %s24, 1
      %p154 = scmp.ne.s32.totalorder %s149, %s151
      %p155 = scmp.eq.s32.totalorder %s24, 0
      %p156 = por %p154, %p155
      %p157 = scmp.ne.s32.totalorder %s149, %s151
      %p158 = scmp.eq.s32.totalorder %s29, 1
      %p159 = por %p157, %p158
      %p160 = scmp.ne.s32.totalorder %s151, %s152
      %p161 = scmp.eq.s32.totalorder %s29, 0
      %p162 = por %p160, %p161
      %p163 = scmp.ne.s32.totalorder %s151, %s152
      %p164 = scmp.eq.s32.totalorder %s30, 1
      %p165 = por %p163, %p164
      %p167 = scmp.ne.s32.totalorder %s152, %s166
      %p168 = scmp.eq.s32.totalorder %s30, 0
      %p169 = por %p167, %p168
      %s171 = sadd.s32 %s170, 1
      %p174 = scmp.eq.s32.totalorder %s24, 1
      %p175 = scmp.ne.s32.totalorder %s170, %s172
      %p176 = scmp.eq.s32.totalorder %s24, 0
      %p177 = por %p175, %p176
      %p178 = scmp.ne.s32.totalorder %s170, %s172
      %p179 = scmp.eq.s32.totalorder %s29, 1
      %p180 = por %p178, %p179
      %p181 = scmp.ne.s32.totalorder %s172, %s173
      %p182 = scmp.eq.s32.totalorder %s29, 0
      %p183 = por %p181, %p182
      %p184 = scmp.ne.s32.totalorder %s172, %s173
      %p185 = scmp.eq.s32.totalorder %s30, 1
      %p186 = por %p184, %p185
      %p188 = scmp.ne.s32.totalorder %s173, %s187
      %p189 = scmp.eq.s32.totalorder %s30, 0
      %p190 = por %p188, %p189
      %s192 = sadd.s32 %s191, 1
      %p195 = scmp.eq.s32.totalorder %s24, 1
      %p196 = scmp.ne.s32.totalorder %s191, %s193
      %p197 = scmp.eq.s32.totalorder %s24, 0
      %p198 = por %p196, %p197
      %p199 = scmp.ne.s32.totalorder %s191, %s193
      %p200 = scmp.eq.s32.totalorder %s29, 1
      %p201 = por %p199, %p200
      %p202 = scmp.ne.s32.totalorder %s193, %s194
      %p203 = scmp.eq.s32.totalorder %s29, 0
      %p204 = por %p202, %p203
      %p205 = scmp.ne.s32.totalorder %s193, %s194
      %p206 = scmp.eq.s32.totalorder %s30, 1
      %p207 = por %p205, %p206
      %p209 = scmp.ne.s32.totalorder %s194, %s208
      %p210 = scmp.eq.s32.totalorder %s30, 0
      %p211 = por %p209, %p210
      %s213 = sadd.s32 %s212, 1
      %p216 = scmp.eq.s32.totalorder %s24, 1
      %p217 = scmp.ne.s32.totalorder %s212, %s214
      %p218 = scmp.eq.s32.totalorder %s24, 0
      %p219 = por %p217, %p218
      %p220 = scmp.ne.s32.totalorder %s212, %s214
      %p221 = scmp.eq.s32.totalorder %s29, 1
      %p222 = por %p220, %p221
      %p223 = scmp.ne.s32.totalorder %s214, %s215
      %p224 = scmp.eq.s32.totalorder %s29, 0
      %p225 = por %p223, %p224
      %p226 = scmp.ne.s32.totalorder %s214, %s215
      %p227 = scmp.eq.s32.totalorder %s30, 1
      %p228 = por %p226, %p227
      %p230 = scmp.ne.s32.totalorder %s215, %s229
      %p231 = scmp.eq.s32.totalorder %s30, 0
      %p232 = por %p230, %p231
      %s233 = ssub.s32 %s31, %s50
      %s234 = ssub.s32 %s32, %s46
      %s235 = sor.u32 %s233, %s234
      %p236 = scmp.eq.s32.totalorder %s235, 0
      %s238 = sadd.s32 %s237, 1
      %s239 = scalar_select %p236, %s237, %s238
      %p242 = pneg %p236
      %p243 = scmp.eq.s32.totalorder %s24, 1
      %p244 = por %p242, %p243
      %p245 = scmp.ne.s32.totalorder %s237, %s240
      %p246 = scmp.eq.s32.totalorder %s24, 0
      %p247 = por %p245, %p246
      %p248 = scmp.ne.s32.totalorder %s237, %s240
      %p249 = scmp.eq.s32.totalorder %s29, 1
      %p250 = por %p248, %p249
      %p251 = scmp.ne.s32.totalorder %s240, %s241
      %p252 = scmp.eq.s32.totalorder %s29, 0
      %p253 = por %p251, %p252
      %p254 = scmp.ne.s32.totalorder %s240, %s241
      %p255 = scmp.eq.s32.totalorder %s30, 1
      %p256 = por %p254, %p255
      %p258 = scmp.ne.s32.totalorder %s241, %s257
      %p259 = scmp.eq.s32.totalorder %s30, 0
      %p260 = por %p258, %p259
      %p261 = scmp.le.s32.totalorder 1, %s24
      %p262 = scmp.lt.s32.totalorder %s24, 3
      %p263 = pnand %p261, %p262
      %p264 = pneg %p263
      // Predicated region
      $region9: #{tpu_custom_call.1} parent=5 // pred_check
        _
      $region10: #{tpu_custom_call.1} parent=5 // pred_check_branch
        %266 = sbr.rel (%p263) target = $region12
      $region11: #{tpu_custom_call.1} parent=5 // pred_region
        %s267 = ssub.s32 %s24, 1
        // Predicated region
        $region13: #{tpu_custom_call.1} parent=11 // pred_check
          %p268 = pneg %p120
        $region14: #{tpu_custom_call.1} parent=11 // pred_check_branch
          %270 = sbr.rel (%p268) target = $region16
        $region15: #{tpu_custom_call.1} parent=11 // pred_region
          %s272 = ssub.s32 512, 512
          %273 = vsyncadd [#allocation7], %s272
          %s274 = sshll.u32 [#allocation8], 4
          %s275 = int_to_ptr.vmem [resolvable:$true] %s274
          %280 = dma.hbm_to_vmem [thread:$0]  %s2, 512, %s275, [#allocation7], 128, 128, 8
        $region16: #{tpu_custom_call.1} parent=11 // pred_fallthru
          _
        // Predicated region
        $region17: #{tpu_custom_call.1} parent=11 // pred_check
          %p281 = pneg %p141
        $region18: #{tpu_custom_call.1} parent=11 // pred_check_branch
          %283 = sbr.rel (%p281) target = $region20
        $region19: #{tpu_custom_call.1} parent=11 // pred_region
          %s285 = ssub.s32 512, 512
          %286 = vsyncadd [#allocation10], %s285
          %s287 = sshll.u32 [#allocation9], 4
          %s288 = int_to_ptr.vmem [resolvable:$true] %s287
          %293 = dma.hbm_to_vmem [thread:$0]  %s3, 512, %s288, [#allocation10], 128, 128, 8
        $region20: #{tpu_custom_call.1} parent=11 // pred_fallthru
          _
        // Predicated region
        $region21: #{tpu_custom_call.1} parent=11 // pred_check
          %p294 = pneg %p162
        $region22: #{tpu_custom_call.1} parent=11 // pred_check_branch
          %296 = sbr.rel (%p294) target = $region24
        $region23: #{tpu_custom_call.1} parent=11 // pred_region
          %s298 = ssub.s32 512, 512
          %299 = vsyncadd [#allocation10], %s298
          %s300 = sshll.u32 [#allocation11], 4
          %s301 = int_to_ptr.vmem [resolvable:$true] %s300
          %306 = dma.hbm_to_vmem [thread:$0]  %s4, 512, %s301, [#allocation10], 128, 128, 8
        $region24: #{tpu_custom_call.1} parent=11 // pred_fallthru
          _
        // Predicated region
        $region25: #{tpu_custom_call.1} parent=11 // pred_check
          %p307 = pneg %p183
        $region26: #{tpu_custom_call.1} parent=11 // pred_check_branch
          %309 = sbr.rel (%p307) target = $region28
        $region27: #{tpu_custom_call.1} parent=11 // pred_region
          _
        $region28: #{tpu_custom_call.1} parent=11 // pred_fallthru
          _
        // Predicated region
        $region29: #{tpu_custom_call.1} parent=11 // pred_check
          %p310 = pneg %p204
        $region30: #{tpu_custom_call.1} parent=11 // pred_check_branch
          %312 = sbr.rel (%p310) target = $region32
        $region31: #{tpu_custom_call.1} parent=11 // pred_region
          _
        $region32: #{tpu_custom_call.1} parent=11 // pred_fallthru
          _
        // Predicated region
        $region33: #{tpu_custom_call.1} parent=11 // pred_check
          %p313 = pneg %p225
        $region34: #{tpu_custom_call.1} parent=11 // pred_check_branch
          %315 = sbr.rel (%p313) target = $region36
        $region35: #{tpu_custom_call.1} parent=11 // pred_region
          _
        $region36: #{tpu_custom_call.1} parent=11 // pred_fallthru
          _
      $region12: #{tpu_custom_call.1} parent=5 // pred_fallthru
        _
      %p316 = scmp.lt.s32.totalorder %s24, 2
      // Predicated region
      $region37: #{tpu_custom_call.1} parent=5 // pred_check
        %p317 = pneg %p316
      $region38: #{tpu_custom_call.1} parent=5 // pred_check_branch
        %319 = sbr.rel (%p317) target = $region40
      $region39: #{tpu_custom_call.1} parent=5 // pred_region
        // Predicated region
        $region41: #{tpu_custom_call.1} parent=39 // pred_check
          %p320 = pneg %p65
        $region42: #{tpu_custom_call.1} parent=39 // pred_check_branch
          %322 = sbr.rel (%p320) target = $region44
        $region43: #{tpu_custom_call.1} parent=39 // pred_region
          %s323 = sand.u32 %s55, 1
          %s324 = scalar_lea.sflag [#allocation4], %s323
          %s325 = sand.u32 %s55, 1
          %s326 = smul.addr %s325, 16
          %s327 = scalar_lea.vmem [#allocation3], %s326
          %s328 = smul.u32 2, %s32
          %s330 = ssub.s32 256, 256
          %331 = vsyncadd %s324, %s330
          %s332 = smul.addr %s31, 2
          %s333 = sadd.s32 %s328, %s332
          %s334 = smul.addr %s333, 128
          %s335 = scalar_lea.hbm %s0, %s334
          %s336 = sshll.u32 %s327, 4
          %s337 = int_to_ptr.vmem [resolvable:$true] %s336
          %342 = dma.hbm_to_vmem [thread:$0]  %s335, 256, %s337, %s324, 128, 128, 8
        $region44: #{tpu_custom_call.1} parent=39 // pred_fallthru
          _
        // Predicated region
        $region45: #{tpu_custom_call.1} parent=39 // pred_check
          %p343 = pneg %p93
        $region46: #{tpu_custom_call.1} parent=39 // pred_check_branch
          %345 = sbr.rel (%p343) target = $region48
        $region47: #{tpu_custom_call.1} parent=39 // pred_region
          %s346 = sand.u32 %s24, 1
          %s347 = scalar_lea.sflag [#allocation7], %s346
          %s348 = sand.u32 %s83, 1
          %s349 = smul.addr %s348, 16
          %s350 = scalar_lea.vmem [#allocation6], %s349
          %s351 = smul.u32 2, %s33
          %s353 = ssub.s32 256, 256
          %354 = vsyncadd %s347, %s353
          %s355 = smul.addr %s31, 2
          %s356 = sadd.s32 %s351, %s355
          %s357 = smul.addr %s356, 128
          %s358 = scalar_lea.hbm %s1, %s357
          %s359 = sshll.u32 %s350, 4
          %s360 = int_to_ptr.vmem [resolvable:$true] %s359
          %365 = dma.hbm_to_vmem [thread:$0]  %s358, 256, %s360, %s347, 128, 128, 8
        $region48: #{tpu_custom_call.1} parent=39 // pred_fallthru
          _
      $region40: #{tpu_custom_call.1} parent=5 // pred_fallthru
        _
      %p366 = scmp.le.s32.totalorder 1, %s24
      %p367 = scmp.lt.s32.totalorder %s24, 3
      %p368 = pnand %p366, %p367
      %p369 = pneg %p368
      // Predicated region
      $region49: #{tpu_custom_call.1} parent=5 // pred_check
        _
      $region50: #{tpu_custom_call.1} parent=5 // pred_check_branch
        %371 = sbr.rel (%p368) target = $region52
      $region51: #{tpu_custom_call.1} parent=5 // pred_region
        %s372 = ssub.s32 %s24, 1
        %s373 = sand.u32 %s58, 1
        %s374 = scalar_lea.sflag [#allocation4], %s373
        %s375 = sand.u32 %s58, 1
        %s376 = smul.addr %s375, 16
        %s377 = scalar_lea.vmem [#allocation3], %s376
        // Predicated region
        $region53: #{tpu_custom_call.1} parent=51 // pred_check
          %p378 = pneg %p71
        $region54: #{tpu_custom_call.1} parent=51 // pred_check_branch
          %380 = sbr.rel (%p378) target = $region56
        $region55: #{tpu_custom_call.1} parent=51 // pred_region
          %381 = dma.done %s374, 256
        $region56: #{tpu_custom_call.1} parent=51 // pred_fallthru
          _
        %s382 = sand.u32 %s29, 1
        %s383 = scalar_lea.sflag [#allocation7], %s382
        %s384 = sand.u32 %s86, 1
        %s385 = smul.addr %s384, 16
        %s386 = scalar_lea.vmem [#allocation6], %s385
        // Predicated region
        $region57: #{tpu_custom_call.1} parent=51 // pred_check
          %p387 = pneg %p99
        $region58: #{tpu_custom_call.1} parent=51 // pred_check_branch
          %389 = sbr.rel (%p387) target = $region60
        $region59: #{tpu_custom_call.1} parent=51 // pred_region
          %390 = dma.done %s383, 256
        $region60: #{tpu_custom_call.1} parent=51 // pred_fallthru
          _
        // Predicated region
        $region61: #{tpu_custom_call.1} parent=51 // pred_check
          %p391 = pneg %p120
        $region62: #{tpu_custom_call.1} parent=51 // pred_check_branch
          %393 = sbr.rel (%p391) target = $region64
        $region63: #{tpu_custom_call.1} parent=51 // pred_region
          %394 = dma.done [#allocation7], 512
        $region64: #{tpu_custom_call.1} parent=51 // pred_fallthru
          _
        // Predicated region
        $region65: #{tpu_custom_call.1} parent=51 // pred_check
          %p395 = pneg %p141
        $region66: #{tpu_custom_call.1} parent=51 // pred_check_branch
          %397 = sbr.rel (%p395) target = $region68
        $region67: #{tpu_custom_call.1} parent=51 // pred_region
          %398 = dma.done [#allocation10], 512
        $region68: #{tpu_custom_call.1} parent=51 // pred_fallthru
          _
        // Predicated region
        $region69: #{tpu_custom_call.1} parent=51 // pred_check
          %p399 = pneg %p162
        $region70: #{tpu_custom_call.1} parent=51 // pred_check_branch
          %401 = sbr.rel (%p399) target = $region72
        $region71: #{tpu_custom_call.1} parent=51 // pred_region
          %402 = dma.done [#allocation10], 512
        $region72: #{tpu_custom_call.1} parent=51 // pred_fallthru
          _
        %s403 = sand.u32 %s58, 1
        %s404 = scalar_lea.sflag [#allocation4], %s403
        %s405 = sand.u32 %s58, 1
        %s406 = smul.addr %s405, 16
        %s407 = scalar_lea.vmem [#allocation3], %s406
        %p408 = pneg %p71
        %p409 = pneg %p68
        %s410 = sand.u32 %s29, 1
        %s411 = scalar_lea.sflag [#allocation7], %s410
        %s412 = sand.u32 %s86, 1
        %s413 = smul.addr %s412, 16
        %s414 = scalar_lea.vmem [#allocation6], %s413
        %p415 = pneg %p99
        %p416 = pneg %p96
        %p417 = pneg %p120
        %p418 = pneg %p117
        %p419 = pneg %p141
        %p420 = pneg %p138
        %p421 = pneg %p162
        %p422 = pneg %p159
        %p423 = pneg %p183
        %p424 = pneg %p180
        %p425 = pneg %p204
        %p426 = pneg %p201
        %p427 = pneg %p225
        %p428 = pneg %p222
        %p429 = pneg %p253
        %p430 = pneg %p250
        %s431 = sand.u32 %s240, 1
        %s432 = scalar_lea.sflag [#allocation5], %s431
        %s433 = sand.u32 %s240, 1
        %s434 = smul.addr %s433, 16
        %s435 = scalar_lea.vmem [#allocation12], %s434
        %s436 = smul.u32 2, %s35
        %s437 = smul.u32 2, %s36
        %s438 = smul.u32 2, %s35
        %v439 = vld [vmem:[%s386] sm:$0xff]
        %v440 = vld [vmem:[%s386 + $0x8] sm:$0xff]
        %v441 = vld [vmem:[#allocation9] sm:$0xff]
        %v442 = vld [vmem:[#allocation9 + $0x8] sm:$0xff]
        %v443 = vld [vmem:[#allocation9 + $0x10] sm:$0xff]
        %v444 = vld [vmem:[#allocation9 + $0x18] sm:$0xff]
        %v445 = vld [vmem:[%s6] sm:$0x1]
        %v447 = vlaneseq
        %v448 = vshrl.u32 %v447, 7
        %v449 = vsub.s32 0, %v448
        %v450 = vrot.slane %v445, %v449
        %vm452 = vcmask 261120
        %v454 = vsel %vm452, %v439, 0
        %v457 = vsel %vm452, %v440, 0
        %459 = vmatprep.subr.mxu0 0.0
        %460 = vmatpush1.msra.mxu0 %v441
        %461 = vmatprep.subr.mxu0 0.0
        %462 = vmatpush1.msra.mxu0 %v442
        %463 = vmatprep.subr.mxu0 0.0
        %464 = vmatpush1.msra.mxu0 %v443
        %465 = vmatprep.subr.mxu0 0.0
        %466 = vmatpush1.msra.mxu0 %v444
        %467 = vmatprep.subr.mxu0 0.0
        %468 = vmatpush1.msra.mxu0 0.0
        %469 = vmatprep.subr.mxu0 0.0
        %470 = vmatpush1.msra.mxu0 0.0
        %471 = vmatprep.subr.mxu0 0.0
        %472 = vmatpush1.msra.mxu0 0.0
        %473 = vmatprep.subr.mxu0 0.0
        %474 = vmatpush1.msra.mxu0 0.0
        %475 = vmatprep.subr.mxu0 0.0
        %476 = vmatpush1.msra.mxu0 0.0
        %477 = vmatprep.subr.mxu0 0.0
        %478 = vmatpush1.msra.mxu0 0.0
        %479 = vmatprep.subr.mxu0 0.0
        %480 = vmatpush1.msra.mxu0 0.0
        %481 = vmatprep.subr.mxu0 0.0
        %482 = vmatpush1.msra.mxu0 0.0
        %483 = vmatprep.subr.mxu0 0.0
        %484 = vmatpush1.msra.mxu0 0.0
        %485 = vmatprep.subr.mxu0 0.0
        %486 = vmatpush1.msra.mxu0 0.0
        %487 = vmatprep.subr.mxu0 0.0
        %488 = vmatpush1.msra.mxu0 0.0
        %489 = vmatprep.subr.mxu0 0.0
        %490 = vmatpush1.msra.mxu0 0.0
        %491 = vmatprep.subr.mxu0 0.0
        %492 = vmatpush1.msra.mxu0 0.0
        %493 = vmatprep.subr.mxu0 0.0
        %494 = vmatpush1.msra.mxu0 0.0
        %495 = vmatprep.subr.mxu0 0.0
        %496 = vmatpush1.msra.mxu0 0.0
        %497 = vmatprep.subr.mxu0 0.0
        %498 = vmatpush1.msra.mxu0 0.0
        %499 = vmatprep.subr.mxu0 0.0
        %500 = vmatpush1.msra.mxu0 0.0
        %501 = vmatprep.subr.mxu0 0.0
        %502 = vmatpush1.msra.mxu0 0.0
        %503 = vmatprep.subr.mxu0 0.0
        %504 = vmatpush1.msra.mxu0 0.0
        %505 = vmatprep.subr.mxu0 0.0
        %506 = vmatpush1.msra.mxu0 0.0
        %507 = vmatprep.subr.mxu0 0.0
        %508 = vmatpush1.msra.mxu0 0.0
        %509 = vmatprep.subr.mxu0 0.0
        %510 = vmatpush1.msra.mxu0 0.0
        %511 = vmatprep.subr.mxu0 0.0
        %512 = vmatpush1.msra.mxu0 0.0
        %513 = vmatprep.subr.mxu0 0.0
        %514 = vmatpush1.msra.mxu0 0.0
        %515 = vmatprep.subr.mxu0 0.0
        %516 = vmatpush1.msra.mxu0 0.0
        %517 = vmatprep.subr.mxu0 0.0
        %518 = vmatpush1.msra.mxu0 0.0
        %519 = vmatprep.subr.mxu0 0.0
        %520 = vmatpush1.msra.mxu0 0.0
        %521 = vmatprep.subr.mxu0 0.0
        %522 = vmatpush1.msra.mxu0 0.0
        %523 = vmatprep.mubr.f32.mxu0 0.0
        %524 = vmatmul.mubr.f32.gmra.mrb[0].mxu0 %v454
        %v525 = vpop.f32.mrb[0].mxu0
        %v526 = vadd.f32 %v450, %v525
        %v527 = vpop.f32.mrb[0].mxu0
        %528 = vmatprep.mubr.f32.mxu0 0.0
        %529 = vmatmul.mubr.f32.gmra.mrb[0].mxu0 %v457
        %v530 = vpop.f32.mrb[0].mxu0
        %v531 = vadd.f32 %v450, %v530
        %v532 = vpop.f32.mrb[0].mxu0
        %533 = vdwg.mxu0
        %v534 = vld [vmem:[%s377] sm:$0xff]
        %v535 = vld [vmem:[%s377 + $0x8] sm:$0xff]
        %v536 = vld [vmem:[#allocation8] sm:$0xff]
        %v537 = vld [vmem:[#allocation8 + $0x8] sm:$0xff]
        %v538 = vld [vmem:[#allocation8 + $0x10] sm:$0xff]
        %v539 = vld [vmem:[#allocation8 + $0x18] sm:$0xff]
        %v540 = vld [vmem:[%s5] sm:$0x1]
        %v542 = vlaneseq
        %v543 = vshrl.u32 %v542, 7
        %v544 = vsub.s32 0, %v543
        %v545 = vrot.slane %v540, %v544
        %v548 = vsel %vm452, %v534, 0
        %v551 = vsel %vm452, %v535, 0
        %553 = vmatprep.subr.mxu0 0.0
        %554 = vmatpush1.msra.mxu0 %v536
        %555 = vmatprep.subr.mxu0 0.0
        %556 = vmatpush1.msra.mxu0 %v537
        %557 = vmatprep.subr.mxu0 0.0
        %558 = vmatpush1.msra.mxu0 %v538
        %559 = vmatprep.subr.mxu0 0.0
        %560 = vmatpush1.msra.mxu0 %v539
        %561 = vmatprep.subr.mxu0 0.0
        %562 = vmatpush1.msra.mxu0 0.0
        %563 = vmatprep.subr.mxu0 0.0
        %564 = vmatpush1.msra.mxu0 0.0
        %565 = vmatprep.subr.mxu0 0.0
        %566 = vmatpush1.msra.mxu0 0.0
        %567 = vmatprep.subr.mxu0 0.0
        %568 = vmatpush1.msra.mxu0 0.0
        %569 = vmatprep.subr.mxu0 0.0
        %570 = vmatpush1.msra.mxu0 0.0
        %571 = vmatprep.subr.mxu0 0.0
        %572 = vmatpush1.msra.mxu0 0.0
        %573 = vmatprep.subr.mxu0 0.0
        %574 = vmatpush1.msra.mxu0 0.0
        %575 = vmatprep.subr.mxu0 0.0
        %576 = vmatpush1.msra.mxu0 0.0
        %577 = vmatprep.subr.mxu0 0.0
        %578 = vmatpush1.msra.mxu0 0.0
        %579 = vmatprep.subr.mxu0 0.0
        %580 = vmatpush1.msra.mxu0 0.0
        %581 = vmatprep.subr.mxu0 0.0
        %582 = vmatpush1.msra.mxu0 0.0
        %583 = vmatprep.subr.mxu0 0.0
        %584 = vmatpush1.msra.mxu0 0.0
        %585 = vmatprep.subr.mxu0 0.0
        %586 = vmatpush1.msra.mxu0 0.0
        %587 = vmatprep.subr.mxu0 0.0
        %588 = vmatpush1.msra.mxu0 0.0
        %589 = vmatprep.subr.mxu0 0.0
        %590 = vmatpush1.msra.mxu0 0.0
        %591 = vmatprep.subr.mxu0 0.0
        %592 = vmatpush1.msra.mxu0 0.0
        %593 = vmatprep.subr.mxu0 0.0
        %594 = vmatpush1.msra.mxu0 0.0
        %595 = vmatprep.subr.mxu0 0.0
        %596 = vmatpush1.msra.mxu0 0.0
        %597 = vmatprep.subr.mxu0 0.0
        %598 = vmatpush1.msra.mxu0 0.0
        %599 = vmatprep.subr.mxu0 0.0
        %600 = vmatpush1.msra.mxu0 0.0
        %601 = vmatprep.subr.mxu0 0.0
        %602 = vmatpush1.msra.mxu0 0.0
        %603 = vmatprep.subr.mxu0 0.0
        %604 = vmatpush1.msra.mxu0 0.0
        %605 = vmatprep.subr.mxu0 0.0
        %606 = vmatpush1.msra.mxu0 0.0
        %607 = vmatprep.subr.mxu0 0.0
        %608 = vmatpush1.msra.mxu0 0.0
        %609 = vmatprep.subr.mxu0 0.0
        %610 = vmatpush1.msra.mxu0 0.0
        %611 = vmatprep.subr.mxu0 0.0
        %612 = vmatpush1.msra.mxu0 0.0
        %613 = vmatprep.subr.mxu0 0.0
        %614 = vmatpush1.msra.mxu0 0.0
        %615 = vmatprep.subr.mxu0 0.0
        %616 = vmatpush1.msra.mxu0 0.0
        %617 = vmatprep.mubr.f32.mxu0 0.0
        %618 = vmatmul.mubr.f32.gmra.mrb[0].mxu0 %v548
        %v619 = vpop.f32.mrb[0].mxu0
        %v620 = vadd.f32 %v545, %v619
        %v621 = vpop.f32.mrb[0].mxu0
        %622 = vmatprep.mubr.f32.mxu0 0.0
        %623 = vmatmul.mubr.f32.gmra.mrb[0].mxu0 %v551
        %v624 = vpop.f32.mrb[0].mxu0
        %v625 = vadd.f32 %v545, %v624
        %v626 = vpop.f32.mrb[0].mxu0
        %627 = vdwg.mxu0
        %vm628 = vcmask 130048
        %v630 = vsel %vm628, %v620, 0
        %v633 = vsel %vm628, %v625, 0
        %v636 = vsel %vm628, %v526, 0
        %v639 = vsel %vm628, %v531, 0
        %641 = vmatprep.subr.mxu0 0.0
        %642 = vmatpush1.xpose.msra.mxu0 %v636
        %643 = vmatprep.subr.mxu0 0.0
        %644 = vmatpush1.xpose.msra.mxu0 %v639
        %645 = vmatprep.subr.mxu0 0.0
        %646 = vmatpush1.xpose.msra.mxu0 0.0
        %647 = vmatprep.subr.mxu0 0.0
        %648 = vmatpush1.xpose.msra.mxu0 0.0
        %649 = vmatprep.subr.mxu0 0.0
        %650 = vmatpush1.xpose.msra.mxu0 0.0
        %651 = vmatprep.subr.mxu0 0.0
        %652 = vmatpush1.xpose.msra.mxu0 0.0
        %653 = vmatprep.subr.mxu0 0.0
        %654 = vmatpush1.xpose.msra.mxu0 0.0
        %655 = vmatprep.subr.mxu0 0.0
        %656 = vmatpush1.xpose.msra.mxu0 0.0
        %657 = vmatprep.subr.mxu0 0.0
        %658 = vmatpush1.xpose.msra.mxu0 0.0
        %659 = vmatprep.subr.mxu0 0.0
        %660 = vmatpush1.xpose.msra.mxu0 0.0
        %661 = vmatprep.subr.mxu0 0.0
        %662 = vmatpush1.xpose.msra.mxu0 0.0
        %663 = vmatprep.subr.mxu0 0.0
        %664 = vmatpush1.xpose.msra.mxu0 0.0
        %665 = vmatprep.subr.mxu0 0.0
        %666 = vmatpush1.xpose.msra.mxu0 0.0
        %667 = vmatprep.subr.mxu0 0.0
        %668 = vmatpush1.xpose.msra.mxu0 0.0
        %669 = vmatprep.subr.mxu0 0.0
        %670 = vmatpush1.xpose.msra.mxu0 0.0
        %671 = vmatprep.subr.mxu0 0.0
        %672 = vmatpush1.xpose.msra.mxu0 0.0
        %673 = vmatprep.subr.mxu0 0.0
        %674 = vmatpush1.xpose.msra.mxu0 0.0
        %675 = vmatprep.subr.mxu0 0.0
        %676 = vmatpush1.xpose.msra.mxu0 0.0
        %677 = vmatprep.subr.mxu0 0.0
        %678 = vmatpush1.xpose.msra.mxu0 0.0
        %679 = vmatprep.subr.mxu0 0.0
        %680 = vmatpush1.xpose.msra.mxu0 0.0
        %681 = vmatprep.subr.mxu0 0.0
        %682 = vmatpush1.xpose.msra.mxu0 0.0
        %683 = vmatprep.subr.mxu0 0.0
        %684 = vmatpush1.xpose.msra.mxu0 0.0
        %685 = vmatprep.subr.mxu0 0.0
        %686 = vmatpush1.xpose.msra.mxu0 0.0
        %687 = vmatprep.subr.mxu0 0.0
        %688 = vmatpush1.xpose.msra.mxu0 0.0
        %689 = vmatprep.subr.mxu0 0.0
        %690 = vmatpush1.xpose.msra.mxu0 0.0
        %691 = vmatprep.subr.mxu0 0.0
        %692 = vmatpush1.xpose.msra.mxu0 0.0
        %693 = vmatprep.subr.mxu0 0.0
        %694 = vmatpush1.xpose.msra.mxu0 0.0
        %695 = vmatprep.subr.mxu0 0.0
        %696 = vmatpush1.xpose.msra.mxu0 0.0
        %697 = vmatprep.subr.mxu0 0.0
        %698 = vmatpush1.xpose.msra.mxu0 0.0
        %699 = vmatprep.subr.mxu0 0.0
        %700 = vmatpush1.xpose.msra.mxu0 0.0
        %701 = vmatprep.subr.mxu0 0.0
        %702 = vmatpush1.xpose.msra.mxu0 0.0
        %703 = vmatprep.subr.mxu0 0.0
        %704 = vmatpush1.xpose.msra.mxu0 0.0
        %705 = vmatprep.mubr.f32.mxu0 0.0
        %706 = vmatmul.mubr.f32.gmra.mrb[0].mxu0 %v630
        %v707 = vpop.f32.mrb[0].mxu0
        %v708 = vadd.f32 0.0, %v707
        %v709 = vpop.f32.mrb[0].mxu0
        %710 = vmatprep.mubr.f32.mxu0 0.0
        %711 = vmatmul.mubr.f32.gmra.mrb[0].mxu0 %v633
        %v712 = vpop.f32.mrb[0].mxu0
        %v713 = vadd.f32 0.0, %v712
        %v714 = vpop.f32.mrb[0].mxu0
        %715 = vdwg.mxu0
        %v716 = vsel %vm628, %v708, -inf
        %717 = vmax.xlane.f32.xlu0 %v716
        %v718 = vpop.xlane.xlu0 %717
        %v719 = vsel %vm628, %v713, -inf
        %720 = vmax.xlane.f32.xlu0 %v719
        %v721 = vpop.xlane.xlu0 %720
        %v722 = vsub.f32 %v708, %v718
        %v723 = vsub.f32 %v713, %v721
        %v724 = vmul.f32 %v722, 1.442695
        %v725 = vpow.pop %v724
        %v726 = vmul.f32 %v723, 1.442695
        %v727 = vpow.pop %v726
        %v728 = vsel %vm628, %v725, 0.0
        %729 = vadd.xlane.f32.xlu0 %v728
        %v730 = vpop.xlane.xlu0 %729
        %v731 = vsel %vm628, %v727, 0.0
        %732 = vadd.xlane.f32.xlu0 %v731
        %v733 = vpop.xlane.xlu0 %732
        %v734 = vrcp.pop %v730
        %v735 = vrcp.pop %v733
        %736 = vrot.lane.b32.xlu0 %v526, 96
        %v737 = vpop.permute.xlu0 %736
        %738 = vrot.lane.b32.xlu0 %v531, 96
        %v739 = vpop.permute.xlu0 %738
        %v743 = vsel %vm628, %v725, 0
        %v746 = vsel %vm628, %v727, 0
        %748 = vmatprep.subr.mxu0 0.0
        %749 = vmatpush1.msra.mxu0 %v737
        %750 = vmatprep.subr.mxu0 0.0
        %751 = vmatpush1.msra.mxu0 %v739
        %752 = vmatprep.subr.mxu0 0.0
        %753 = vmatpush1.msra.mxu0 0.0
        %754 = vmatprep.subr.mxu0 0.0
        %755 = vmatpush1.msra.mxu0 0.0
        %756 = vmatprep.subr.mxu0 0.0
        %757 = vmatpush1.msra.mxu0 0.0
        %758 = vmatprep.subr.mxu0 0.0
        %759 = vmatpush1.msra.mxu0 0.0
        %760 = vmatprep.subr.mxu0 0.0
        %761 = vmatpush1.msra.mxu0 0.0
        %762 = vmatprep.subr.mxu0 0.0
        %763 = vmatpush1.msra.mxu0 0.0
        %764 = vmatprep.subr.mxu0 0.0
        %765 = vmatpush1.msra.mxu0 0.0
        %766 = vmatprep.subr.mxu0 0.0
        %767 = vmatpush1.msra.mxu0 0.0
        %768 = vmatprep.subr.mxu0 0.0
        %769 = vmatpush1.msra.mxu0 0.0
        %770 = vmatprep.subr.mxu0 0.0
        %771 = vmatpush1.msra.mxu0 0.0
        %772 = vmatprep.subr.mxu0 0.0
        %773 = vmatpush1.msra.mxu0 0.0
        %774 = vmatprep.subr.mxu0 0.0
        %775 = vmatpush1.msra.mxu0 0.0
        %776 = vmatprep.subr.mxu0 0.0
        %777 = vmatpush1.msra.mxu0 0.0
        %778 = vmatprep.subr.mxu0 0.0
        %779 = vmatpush1.msra.mxu0 0.0
        %780 = vmatprep.subr.mxu0 0.0
        %781 = vmatpush1.msra.mxu0 0.0
        %782 = vmatprep.subr.mxu0 0.0
        %783 = vmatpush1.msra.mxu0 0.0
        %784 = vmatprep.subr.mxu0 0.0
        %785 = vmatpush1.msra.mxu0 0.0
        %786 = vmatprep.subr.mxu0 0.0
        %787 = vmatpush1.msra.mxu0 0.0
        %788 = vmatprep.subr.mxu0 0.0
        %789 = vmatpush1.msra.mxu0 0.0
        %790 = vmatprep.subr.mxu0 0.0
        %791 = vmatpush1.msra.mxu0 0.0
        %792 = vmatprep.subr.mxu0 0.0
        %793 = vmatpush1.msra.mxu0 0.0
        %794 = vmatprep.subr.mxu0 0.0
        %795 = vmatpush1.msra.mxu0 0.0
        %796 = vmatprep.subr.mxu0 0.0
        %797 = vmatpush1.msra.mxu0 0.0
        %798 = vmatprep.subr.mxu0 0.0
        %799 = vmatpush1.msra.mxu0 0.0
        %800 = vmatprep.subr.mxu0 0.0
        %801 = vmatpush1.msra.mxu0 0.0
        %802 = vmatprep.subr.mxu0 0.0
        %803 = vmatpush1.msra.mxu0 0.0
        %804 = vmatprep.subr.mxu0 0.0
        %805 = vmatpush1.msra.mxu0 0.0
        %806 = vmatprep.subr.mxu0 0.0
        %807 = vmatpush1.msra.mxu0 0.0
        %808 = vmatprep.subr.mxu0 0.0
        %809 = vmatpush1.msra.mxu0 0.0
        %810 = vmatprep.subr.mxu0 0.0
        %811 = vmatpush1.msra.mxu0 0.0
        %812 = vmatprep.mubr.f32.mxu0 0.0
        %813 = vmatmul.mubr.f32.gmra.mrb[0].mxu0 %v743
        %v814 = vpop.f32.mrb[0].mxu0
        %v815 = vadd.f32 0.0, %v814
        %v816 = vpop.f32.mrb[0].mxu0
        %817 = vmatprep.mubr.f32.mxu0 0.0
        %818 = vmatmul.mubr.f32.gmra.mrb[0].mxu0 %v746
        %v819 = vpop.f32.mrb[0].mxu0
        %v820 = vadd.f32 0.0, %v819
        %v821 = vpop.f32.mrb[0].mxu0
        %822 = vdwg.mxu0
        %v823 = vmul.f32 %v815, %v734
        %v824 = vmul.f32 %v820, %v735
        %825 = vst.msk [vmem:[#allocation2] sm:$0xff] %vm628, %v823
        %826 = vst.msk [vmem:[#allocation2 + $0x8] sm:$0xff] %vm628, %v824
        %827 = vrot.lane.b32.xlu0 %v620, 112
        %v828 = vpop.permute.xlu0 %827
        %829 = vrot.lane.b32.xlu0 %v625, 112
        %v830 = vpop.permute.xlu0 %829
        %831 = vrot.lane.b32.xlu0 %v526, 112
        %v832 = vpop.permute.xlu0 %831
        %833 = vrot.lane.b32.xlu0 %v531, 112
        %v834 = vpop.permute.xlu0 %833
        %v835 = vsel %vm628, %v828, 0
        %v837 = vsel %vm628, %v830, 0
        %v839 = vsel %vm628, %v832, 0
        %v841 = vsel %vm628, %v834, 0
        %843 = vmatprep.subr.mxu0 0.0
        %844 = vmatpush1.xpose.msra.mxu0 %v839
        %845 = vmatprep.subr.mxu0 0.0
        %846 = vmatpush1.xpose.msra.mxu0 %v841
        %847 = vmatprep.subr.mxu0 0.0
        %848 = vmatpush1.xpose.msra.mxu0 0.0
        %849 = vmatprep.subr.mxu0 0.0
        %850 = vmatpush1.xpose.msra.mxu0 0.0
        %851 = vmatprep.subr.mxu0 0.0
        %852 = vmatpush1.xpose.msra.mxu0 0.0
        %853 = vmatprep.subr.mxu0 0.0
        %854 = vmatpush1.xpose.msra.mxu0 0.0
        %855 = vmatprep.subr.mxu0 0.0
        %856 = vmatpush1.xpose.msra.mxu0 0.0
        %857 = vmatprep.subr.mxu0 0.0
        %858 = vmatpush1.xpose.msra.mxu0 0.0
        %859 = vmatprep.subr.mxu0 0.0
        %860 = vmatpush1.xpose.msra.mxu0 0.0
        %861 = vmatprep.subr.mxu0 0.0
        %862 = vmatpush1.xpose.msra.mxu0 0.0
        %863 = vmatprep.subr.mxu0 0.0
        %864 = vmatpush1.xpose.msra.mxu0 0.0
        %865 = vmatprep.subr.mxu0 0.0
        %866 = vmatpush1.xpose.msra.mxu0 0.0
        %867 = vmatprep.subr.mxu0 0.0
        %868 = vmatpush1.xpose.msra.mxu0 0.0
        %869 = vmatprep.subr.mxu0 0.0
        %870 = vmatpush1.xpose.msra.mxu0 0.0
        %871 = vmatprep.subr.mxu0 0.0
        %872 = vmatpush1.xpose.msra.mxu0 0.0
        %873 = vmatprep.subr.mxu0 0.0
        %874 = vmatpush1.xpose.msra.mxu0 0.0
        %875 = vmatprep.subr.mxu0 0.0
        %876 = vmatpush1.xpose.msra.mxu0 0.0
        %877 = vmatprep.subr.mxu0 0.0
        %878 = vmatpush1.xpose.msra.mxu0 0.0
        %879 = vmatprep.subr.mxu0 0.0
        %880 = vmatpush1.xpose.msra.mxu0 0.0
        %881 = vmatprep.subr.mxu0 0.0
        %882 = vmatpush1.xpose.msra.mxu0 0.0
        %883 = vmatprep.subr.mxu0 0.0
        %884 = vmatpush1.xpose.msra.mxu0 0.0
        %885 = vmatprep.subr.mxu0 0.0
        %886 = vmatpush1.xpose.msra.mxu0 0.0
        %887 = vmatprep.subr.mxu0 0.0
        %888 = vmatpush1.xpose.msra.mxu0 0.0
        %889 = vmatprep.subr.mxu0 0.0
        %890 = vmatpush1.xpose.msra.mxu0 0.0
        %891 = vmatprep.subr.mxu0 0.0
        %892 = vmatpush1.xpose.msra.mxu0 0.0
        %893 = vmatprep.subr.mxu0 0.0
        %894 = vmatpush1.xpose.msra.mxu0 0.0
        %895 = vmatprep.subr.mxu0 0.0
        %896 = vmatpush1.xpose.msra.mxu0 0.0
        %897 = vmatprep.subr.mxu0 0.0
        %898 = vmatpush1.xpose.msra.mxu0 0.0
        %899 = vmatprep.subr.mxu0 0.0
        %900 = vmatpush1.xpose.msra.mxu0 0.0
        %901 = vmatprep.subr.mxu0 0.0
        %902 = vmatpush1.xpose.msra.mxu0 0.0
        %903 = vmatprep.subr.mxu0 0.0
        %904 = vmatpush1.xpose.msra.mxu0 0.0
        %905 = vmatprep.subr.mxu0 0.0
        %906 = vmatpush1.xpose.msra.mxu0 0.0
        %907 = vmatprep.mubr.f32.mxu0 0.0
        %908 = vmatmul.mubr.f32.gmra.mrb[0].mxu0 %v835
        %v909 = vpop.f32.mrb[0].mxu0
        %v910 = vadd.f32 0.0, %v909
        %v911 = vpop.f32.mrb[0].mxu0
        %912 = vmatprep.mubr.f32.mxu0 0.0
        %913 = vmatmul.mubr.f32.gmra.mrb[0].mxu0 %v837
        %v914 = vpop.f32.mrb[0].mxu0
        %v915 = vadd.f32 0.0, %v914
        %v916 = vpop.f32.mrb[0].mxu0
        %917 = vdwg.mxu0
        %v918 = vsel %vm628, %v910, -inf
        %919 = vmax.xlane.f32.xlu0 %v918
        %v920 = vpop.xlane.xlu0 %919
        %v921 = vsel %vm628, %v915, -inf
        %922 = vmax.xlane.f32.xlu0 %v921
        %v923 = vpop.xlane.xlu0 %922
        %v924 = vsub.f32 %v910, %v920
        %v925 = vsub.f32 %v915, %v923
        %v926 = vmul.f32 %v924, 1.442695
        %v927 = vpow.pop %v926
        %v928 = vmul.f32 %v925, 1.442695
        %v929 = vpow.pop %v928
        %v930 = vsel %vm628, %v927, 0.0
        %931 = vadd.xlane.f32.xlu0 %v930
        %v932 = vpop.xlane.xlu0 %931
        %v933 = vsel %vm628, %v929, 0.0
        %934 = vadd.xlane.f32.xlu0 %v933
        %v935 = vpop.xlane.xlu0 %934
        %v936 = vrcp.pop %v932
        %v937 = vrcp.pop %v935
        %938 = vrot.lane.b32.xlu0 %v526, 80
        %v939 = vpop.permute.xlu0 %938
        %940 = vrot.lane.b32.xlu0 %v531, 80
        %v941 = vpop.permute.xlu0 %940
        %v945 = vsel %vm628, %v927, 0
        %v948 = vsel %vm628, %v929, 0
        %950 = vmatprep.subr.mxu0 0.0
        %951 = vmatpush1.msra.mxu0 %v939
        %952 = vmatprep.subr.mxu0 0.0
        %953 = vmatpush1.msra.mxu0 %v941
        %954 = vmatprep.subr.mxu0 0.0
        %955 = vmatpush1.msra.mxu0 0.0
        %956 = vmatprep.subr.mxu0 0.0
        %957 = vmatpush1.msra.mxu0 0.0
        %958 = vmatprep.subr.mxu0 0.0
        %959 = vmatpush1.msra.mxu0 0.0
        %960 = vmatprep.subr.mxu0 0.0
        %961 = vmatpush1.msra.mxu0 0.0
        %962 = vmatprep.subr.mxu0 0.0
        %963 = vmatpush1.msra.mxu0 0.0
        %964 = vmatprep.subr.mxu0 0.0
        %965 = vmatpush1.msra.mxu0 0.0
        %966 = vmatprep.subr.mxu0 0.0
        %967 = vmatpush1.msra.mxu0 0.0
        %968 = vmatprep.subr.mxu0 0.0
        %969 = vmatpush1.msra.mxu0 0.0
        %970 = vmatprep.subr.mxu0 0.0
        %971 = vmatpush1.msra.mxu0 0.0
        %972 = vmatprep.subr.mxu0 0.0
        %973 = vmatpush1.msra.mxu0 0.0
        %974 = vmatprep.subr.mxu0 0.0
        %975 = vmatpush1.msra.mxu0 0.0
        %976 = vmatprep.subr.mxu0 0.0
        %977 = vmatpush1.msra.mxu0 0.0
        %978 = vmatprep.subr.mxu0 0.0
        %979 = vmatpush1.msra.mxu0 0.0
        %980 = vmatprep.subr.mxu0 0.0
        %981 = vmatpush1.msra.mxu0 0.0
        %982 = vmatprep.subr.mxu0 0.0
        %983 = vmatpush1.msra.mxu0 0.0
        %984 = vmatprep.subr.mxu0 0.0
        %985 = vmatpush1.msra.mxu0 0.0
        %986 = vmatprep.subr.mxu0 0.0
        %987 = vmatpush1.msra.mxu0 0.0
        %988 = vmatprep.subr.mxu0 0.0
        %989 = vmatpush1.msra.mxu0 0.0
        %990 = vmatprep.subr.mxu0 0.0
        %991 = vmatpush1.msra.mxu0 0.0
        %992 = vmatprep.subr.mxu0 0.0
        %993 = vmatpush1.msra.mxu0 0.0
        %994 = vmatprep.subr.mxu0 0.0
        %995 = vmatpush1.msra.mxu0 0.0
        %996 = vmatprep.subr.mxu0 0.0
        %997 = vmatpush1.msra.mxu0 0.0
        %998 = vmatprep.subr.mxu0 0.0
        %999 = vmatpush1.msra.mxu0 0.0
        %1000 = vmatprep.subr.mxu0 0.0
        %1001 = vmatpush1.msra.mxu0 0.0
        %1002 = vmatprep.subr.mxu0 0.0
        %1003 = vmatpush1.msra.mxu0 0.0
        %1004 = vmatprep.subr.mxu0 0.0
        %1005 = vmatpush1.msra.mxu0 0.0
        %1006 = vmatprep.subr.mxu0 0.0
        %1007 = vmatpush1.msra.mxu0 0.0
        %1008 = vmatprep.subr.mxu0 0.0
        %1009 = vmatpush1.msra.mxu0 0.0
        %1010 = vmatprep.subr.mxu0 0.0
        %1011 = vmatpush1.msra.mxu0 0.0
        %1012 = vmatprep.subr.mxu0 0.0
        %1013 = vmatpush1.msra.mxu0 0.0
        %1014 = vmatprep.mubr.f32.mxu0 0.0
        %1015 = vmatmul.mubr.f32.gmra.mrb[0].mxu0 %v945
        %v1016 = vpop.f32.mrb[0].mxu0
        %v1017 = vadd.f32 0.0, %v1016
        %v1018 = vpop.f32.mrb[0].mxu0
        %1019 = vmatprep.mubr.f32.mxu0 0.0
        %1020 = vmatmul.mubr.f32.gmra.mrb[0].mxu0 %v948
        %v1021 = vpop.f32.mrb[0].mxu0
        %v1022 = vadd.f32 0.0, %v1021
        %v1023 = vpop.f32.mrb[0].mxu0
        %1024 = vdwg.mxu0
        %v1025 = vmul.f32 %v1017, %v936
        %v1026 = vmul.f32 %v1022, %v937
        %1029 = vrot.lane.b32.xlu0 %v1025, 16
        %v1030 = vpop.permute.xlu0 %1029
        %1031 = vrot.lane.b32.xlu0 %v1026, 16
        %v1032 = vpop.permute.xlu0 %1031
        %vm1035 = vcmask 261248
        %1036 = vst.msk [vmem:[#allocation2] sm:$0xff] %vm1035, %v1030
        %1037 = vst.msk [vmem:[#allocation2 + $0x8] sm:$0xff] %vm1035, %v1032
        %v1038 = vld [vmem:[#allocation2] sm:$0xff]
        %v1039 = vld [vmem:[#allocation2 + $0x8] sm:$0xff]
        %v1040 = vld [vmem:[#allocation11] sm:$0xff]
        %v1041 = vld [vmem:[#allocation11 + $0x8] sm:$0xff]
        %v1042 = vld [vmem:[#allocation11 + $0x10] sm:$0xff]
        %v1043 = vld [vmem:[#allocation11 + $0x18] sm:$0xff]
        %v1044 = vld [vmem:[%s7] sm:$0x1]
        %v1046 = vlaneseq
        %v1047 = vshrl.u32 %v1046, 7
        %v1048 = vsub.s32 0, %v1047
        %v1049 = vrot.slane %v1044, %v1048
        %v1052 = vsel %vm452, %v1038, 0
        %v1055 = vsel %vm452, %v1039, 0
        %1057 = vmatprep.subr.mxu0 0.0
        %1058 = vmatpush1.msra.mxu0 %v1040
        %1059 = vmatprep.subr.mxu0 0.0
        %1060 = vmatpush1.msra.mxu0 %v1041
        %1061 = vmatprep.subr.mxu0 0.0
        %1062 = vmatpush1.msra.mxu0 %v1042
        %1063 = vmatprep.subr.mxu0 0.0
        %1064 = vmatpush1.msra.mxu0 %v1043
        %1065 = vmatprep.subr.mxu0 0.0
        %1066 = vmatpush1.msra.mxu0 0.0
        %1067 = vmatprep.subr.mxu0 0.0
        %1068 = vmatpush1.msra.mxu0 0.0
        %1069 = vmatprep.subr.mxu0 0.0
        %1070 = vmatpush1.msra.mxu0 0.0
        %1071 = vmatprep.subr.mxu0 0.0
        %1072 = vmatpush1.msra.mxu0 0.0
        %1073 = vmatprep.subr.mxu0 0.0
        %1074 = vmatpush1.msra.mxu0 0.0
        %1075 = vmatprep.subr.mxu0 0.0
        %1076 = vmatpush1.msra.mxu0 0.0
        %1077 = vmatprep.subr.mxu0 0.0
        %1078 = vmatpush1.msra.mxu0 0.0
        %1079 = vmatprep.subr.mxu0 0.0
        %1080 = vmatpush1.msra.mxu0 0.0
        %1081 = vmatprep.subr.mxu0 0.0
        %1082 = vmatpush1.msra.mxu0 0.0
        %1083 = vmatprep.subr.mxu0 0.0
        %1084 = vmatpush1.msra.mxu0 0.0
        %1085 = vmatprep.subr.mxu0 0.0
        %1086 = vmatpush1.msra.mxu0 0.0
        %1087 = vmatprep.subr.mxu0 0.0
        %1088 = vmatpush1.msra.mxu0 0.0
        %1089 = vmatprep.subr.mxu0 0.0
        %1090 = vmatpush1.msra.mxu0 0.0
        %1091 = vmatprep.subr.mxu0 0.0
        %1092 = vmatpush1.msra.mxu0 0.0
        %1093 = vmatprep.subr.mxu0 0.0
        %1094 = vmatpush1.msra.mxu0 0.0
        %1095 = vmatprep.subr.mxu0 0.0
        %1096 = vmatpush1.msra.mxu0 0.0
        %1097 = vmatprep.subr.mxu0 0.0
        %1098 = vmatpush1.msra.mxu0 0.0
        %1099 = vmatprep.subr.mxu0 0.0
        %1100 = vmatpush1.msra.mxu0 0.0
        %1101 = vmatprep.subr.mxu0 0.0
        %1102 = vmatpush1.msra.mxu0 0.0
        %1103 = vmatprep.subr.mxu0 0.0
        %1104 = vmatpush1.msra.mxu0 0.0
        %1105 = vmatprep.subr.mxu0 0.0
        %1106 = vmatpush1.msra.mxu0 0.0
        %1107 = vmatprep.subr.mxu0 0.0
        %1108 = vmatpush1.msra.mxu0 0.0
        %1109 = vmatprep.subr.mxu0 0.0
        %1110 = vmatpush1.msra.mxu0 0.0
        %1111 = vmatprep.subr.mxu0 0.0
        %1112 = vmatpush1.msra.mxu0 0.0
        %1113 = vmatprep.subr.mxu0 0.0
        %1114 = vmatpush1.msra.mxu0 0.0
        %1115 = vmatprep.subr.mxu0 0.0
        %1116 = vmatpush1.msra.mxu0 0.0
        %1117 = vmatprep.subr.mxu0 0.0
        %1118 = vmatpush1.msra.mxu0 0.0
        %1119 = vmatprep.subr.mxu0 0.0
        %1120 = vmatpush1.msra.mxu0 0.0
        %1121 = vmatprep.mubr.f32.mxu0 0.0
        %1122 = vmatmul.mubr.f32.gmra.mrb[0].mxu0 %v1052
        %v1123 = vpop.f32.mrb[0].mxu0
        %v1124 = vadd.f32 %v1049, %v1123
        %v1125 = vpop.f32.mrb[0].mxu0
        %1126 = vmatprep.mubr.f32.mxu0 0.0
        %1127 = vmatmul.mubr.f32.gmra.mrb[0].mxu0 %v1055
        %v1128 = vpop.f32.mrb[0].mxu0
        %v1129 = vadd.f32 %v1049, %v1128
        %v1130 = vpop.f32.mrb[0].mxu0
        %1131 = vdwg.mxu0
        %1132 = vst.msk [vmem:[%s435] sm:$0xff] %vm452, %v1124
        %1133 = vst.msk [vmem:[%s435 + $0x8] sm:$0xff] %vm452, %v1129
        %s1134 = sand.u32 %s240, 1
        %s1135 = scalar_lea.sflag [#allocation5], %s1134
        %s1136 = sand.u32 %s240, 1
        %s1137 = smul.addr %s1136, 16
        %s1138 = scalar_lea.vmem [#allocation12], %s1137
        // Predicated region
        $region73: #{tpu_custom_call.1} parent=51 // pred_check
          %p1139 = pneg %p250
        $region74: #{tpu_custom_call.1} parent=51 // pred_check_branch
          %1141 = sbr.rel (%p1139) target = $region76
        $region75: #{tpu_custom_call.1} parent=51 // pred_region
          %s1142 = smul.u32 2, %s35
          %s1144 = ssub.s32 256, 256
          %1145 = vsyncadd %s1135, %s1144
          %s1146 = smul.addr %s34, 2
          %s1147 = sadd.s32 %s1142, %s1146
          %s1148 = smul.addr %s1147, 128
          %s1149 = scalar_lea.hbm %s8, %s1148
          %s1150 = sshll.u32 %s1138, 4
          %s1151 = int_to_ptr.vmem [resolvable:$true] %s1150
          %1156 = dma.vmem_to_hbm [thread:$0]  %s1151, 256, %s1149, %s1135, 128, 128, 8
        $region76: #{tpu_custom_call.1} parent=51 // pred_fallthru
          _
      $region52: #{tpu_custom_call.1} parent=5 // pred_fallthru
        _
      %p1157 = scmp.le.s32.totalorder 2, %s24
      // Predicated region
      $region77: #{tpu_custom_call.1} parent=5 // pred_check
        %p1158 = pneg %p1157
      $region78: #{tpu_custom_call.1} parent=5 // pred_check_branch
        %1160 = sbr.rel (%p1158) target = $region80
      $region79: #{tpu_custom_call.1} parent=5 // pred_region
        %s1161 = ssub.s32 %s24, 2
        // Predicated region
        $region81: #{tpu_custom_call.1} parent=79 // pred_check
          %p1162 = pneg %p256
        $region82: #{tpu_custom_call.1} parent=79 // pred_check_branch
          %1164 = sbr.rel (%p1162) target = $region84
        $region83: #{tpu_custom_call.1} parent=79 // pred_region
          %s1165 = sand.u32 %s241, 1
          %s1166 = scalar_lea.sflag [#allocation5], %s1165
          %s1167 = sand.u32 %s241, 1
          %s1168 = smul.addr %s1167, 16
          %s1169 = scalar_lea.vmem [#allocation12], %s1168
          %1170 = dma.done %s1166, 256
        $region84: #{tpu_custom_call.1} parent=79 // pred_fallthru
          _
      $region80: #{tpu_custom_call.1} parent=5 // pred_fallthru
        _
    $region6: #{tpu_custom_call.1} parent=1 // loop_footer
      %s28 = sadd.s32 1, %s24
    $region7: #{tpu_custom_call.1} parent=1 // loop_footer_branch
      %23 = sbr.rel target = $region3
    $region8: #{tpu_custom_call.1} parent=1 // loop_exit
      _
    %1171 = vsyncpa [#allocation4], 1
    %s1172 = scalar_lea.sflag [#allocation4], 1
    %1173 = vsyncpa %s1172, 1
    %1174 = vsyncpa [#allocation7], 1
    %s1175 = scalar_lea.sflag [#allocation7], 1
    %1176 = vsyncpa %s1175, 1
    %1177 = vsyncpa [#allocation10], 1
    %1178 = vsyncpa [#allocation5], 1
    %s1179 = scalar_lea.sflag [#allocation5], 1
    %1180 = vsyncpa %s1179, 1

</llo_original>
